<compile_context>
chip_gen: v7x
topology: tpu7x:2x2x1
jax: 0.10.0
libtpu: 0.0.40
codegen_flags: <defaults>
</compile_context>

<pallas_src>
import functools
import math

import jax
import jax.numpy as jnp
from jax.experimental import pallas as pl
from jax.experimental.pallas import tpu as pltpu

_MiB = 1024 * 1024
_LANE = 128


def _cdiv(a, b):
    return -(-a // b)


def _round_up(x, m):
    return ((x + m - 1) // m) * m


def _sublane_multiple(dtype):
    itemsize = jnp.dtype(dtype).itemsize
    return {4: 8, 2: 16, 1: 32}.get(itemsize, 8)


def _vmem_capacity_bytes():
    """Physical VMEM of the local chip (conservative fallback: v7x 64 MiB)."""
    try:
        info = pltpu.get_tpu_info()
        cap = getattr(info, "vmem_capacity_bytes", None)
        if cap:
            return int(cap)
    except Exception:
        pass
    return 64 * _MiB


def _pad_rows_kernel(x_ref, o_ref, *, n, d):
    # Bulk copy of the original row; lane-dense (unmasked vst) when n%128==0.
    o_ref[:, :n] = x_ref[...]
    # Periodic wrap: append the first d lanes.  d is a static Python int, so
    # this slice is compiled out entirely when d == 0.
    if d > 0:
        o_ref[:, n:] = x_ref[:, :d]


def _pad_tiled_kernel(x_main_ref, x_wrap_ref, o_ref, *, n_main_tiles):
    # 2-D (row-tile, n-tile) fallback for very wide rows.  Main tiles copy the
    # aligned input tile; trailing tile(s) copy the wrap columns (x[:, :d]),
    # which the x_wrap BlockSpec already positioned at the right columns.
    j = pl.program_id(1)

    @pl.when(j < n_main_tiles)
    def _():
        o_ref[...] = x_main_ref[...]

    @pl.when(j >= n_main_tiles)
    def _():
        o_ref[...] = x_wrap_ref[...]


def forward_padding(x, d, *, pair_budget_bytes=None):
    """Periodic forward padding on the last dimension (Pallas TPU kernel)."""
    n = x.shape[-1]
    assert 0 <= d <= n, "d must be in [0, last-dim size]"
    lead = x.shape[:-1]
    rows_total = int(math.prod(lead)) if lead else 1
    out_n = n + d

    # Sublane-flatten: (..., N) -> (rows_total, N).
    x2 = x.reshape(rows_total, n)

    dtype = x.dtype
    itemsize = jnp.dtype(dtype).itemsize
    sub = _sublane_multiple(dtype)

    # Lane-padded per-row VMEM footprint of one (input row + output row).
    bytes_per_row = (_round_up(n, _LANE) + _round_up(out_n, _LANE)) * itemsize

    # Per-chip budget for one in+out tile pair.  The BlockSpec pipeline
    # double-buffers, so the real VMEM footprint is ~2x this; we raise
    # vmem_limit_bytes explicitly so the default scoped limits never bind.
    if pair_budget_bytes is None:
        cap = _vmem_capacity_bytes()
        pair_budget_bytes = 12 * _MiB if cap >= 96 * _MiB else 10 * _MiB

    min_pair_bytes = sub * bytes_per_row  # smallest legal 1-D row tile

    if min_pair_bytes <= pair_budget_bytes or n % _LANE != 0:
        # -------- 1-D row-tiled path (the common case) --------
        # TODO(synk): rows with n not 128-aligned AND wider than the VMEM
        # budget fall through here with a raised vmem limit instead of a
        # lane-tiled fallback (unaligned N-tiling needs masked column math).
        rows = max(sub, (pair_budget_bytes // bytes_per_row) // sub * sub)
        # v7x megacore: keep >= 2 steps on the "parallel" row axis when the
        # array is big enough, so both TensorCores get a share of the copy.
        if rows_total >= 2 * sub:
            rows = min(rows, _round_up(_cdiv(rows_total, 2), sub))
        if rows >= rows_total:
            rows = rows_total  # full-extent block is always legal

        grid = (_cdiv(rows_total, rows),)
        in_specs = [pl.BlockSpec((rows, n), lambda i: (i, 0))]
        out_specs = pl.BlockSpec((rows, out_n), lambda i: (i, 0))
        kernel = functools.partial(_pad_rows_kernel, n=n, d=d)
        dim_sem = ("parallel",)
        step_bytes = rows * bytes_per_row
        operands = (x2,)
    else:
        # -------- 2-D (row-tiles, N-tiles) fallback for very wide rows ------
        # Pick an N-tile that divides n and is a multiple of 128, so the
        # periodic-wrap region [n, n+d) lands in its own trailing tile(s).
        tn_target = max(
            _LANE, (pair_budget_bytes // (3 * sub * itemsize)) // _LANE * _LANE
        )
        m = n // _LANE
        q = 1
        for cand in range(min(m, max(1, tn_target // _LANE)), 0, -1):
            if m % cand == 0:
                q = cand
                break
        tn = q * _LANE

        rows = max(sub, (pair_budget_bytes // (3 * tn * itemsize)) // sub * sub)
        if rows_total >= 2 * sub:
            rows = min(rows, _round_up(_cdiv(rows_total, 2), sub))
        if rows >= rows_total:
            rows = rows_total

        n_main = n // tn
        n_tail = _cdiv(d, tn) if d > 0 else 0
        grid = (_cdiv(rows_total, rows), n_main + n_tail)

        in_specs = [
            # Main view: aligned input tile (clamped on tail steps; the
            # clamped index equals the previous one, so no extra DMA).
            pl.BlockSpec((rows, tn),
                         lambda i, j: (i, jnp.minimum(j, n_main - 1))),
            # Wrap view: points at the wrap columns for tail tiles; constant
            # (i, 0) across main tiles so it is fetched once per row tile.
            pl.BlockSpec((rows, tn),
                         lambda i, j: (i, jnp.maximum(j - n_main, 0))),
        ]
        out_specs = pl.BlockSpec((rows, tn), lambda i, j: (i, j))
        kernel = functools.partial(_pad_tiled_kernel, n_main_tiles=n_main)
        dim_sem = ("parallel", "arbitrary")
        step_bytes = 3 * rows * tn * itemsize
        operands = (x2, x2)

    # Double-buffered footprint + headroom; always within physical VMEM on
    # v5e/v6e (128 MiB) and v7x (64 MiB) for the budgets chosen above.
    vmem_limit = int(max(24 * _MiB, 2 * step_bytes + 4 * _MiB))

    out2 = pl.pallas_call(
        kernel,
        out_shape=jax.ShapeDtypeStruct((rows_total, out_n), dtype),
        grid=grid,
        in_specs=in_specs,
        out_specs=out_specs,
        compiler_params=pltpu.CompilerParams(
            dimension_semantics=dim_sem,
            vmem_limit_bytes=vmem_limit,
        ),
        cost_estimate=pl.CostEstimate(
            flops=0,
            transcendentals=0,
            bytes_accessed=(rows_total * n + rows_total * out_n) * itemsize,
        ),
    )(*operands)

    return out2.reshape(*lead, out_n)


def _reference(x, d):
    return jnp.concatenate([x, x[..., :d]], axis=-1) if d > 0 else x


if __name__ == "__main__":
    key = jax.random.PRNGKey(0)

    # 1) Main case: small (B, C, N) activation, f32.
    B, C, N = 2, 4, 16
    d = 4
    x = jax.random.normal(key, (B, C, N), dtype=jnp.float32)
    out = jax.block_until_ready(forward_padding(x, d))
    assert out.shape == (B, C, N + d) and out.dtype == x.dtype
    assert jnp.array_equal(out, _reference(x, d)), "main case mismatch"

    # 2) d == 0: wrap store must be compiled out cleanly.
    out0 = jax.block_until_ready(forward_padding(x, 0))
    assert jnp.array_equal(out0, x), "d=0 mismatch"

    # 3) bf16 (dtype-aware sublane rounding path).
    xb = x.astype(jnp.bfloat16)
    outb = jax.block_until_ready(forward_padding(xb, d))
    assert jnp.array_equal(outb, _reference(xb, d)), "bf16 mismatch"

    # 4) Partial last row tile: rows_total not a multiple of the tile and the
    #    budget forced small so grid=(2,) with a masked final tile.
    x3 = jax.random.normal(jax.random.PRNGKey(1), (13, 16), dtype=jnp.float32)
    out3 = jax.block_until_ready(forward_padding(x3, 3, pair_budget_bytes=4096))
    assert out3.shape == (13, 19)
    assert jnp.array_equal(out3, _reference(x3, 3)), "partial row tile mismatch"

    # 5) Forced 2-D lane-tiled fallback (wide-row path), including a wrap that
    #    spans multiple trailing N-tiles (d > tn) and a partial row tile.
    x4 = jax.random.normal(jax.random.PRNGKey(2), (13, 256), dtype=jnp.float32)
    d4 = 130
    out4 = jax.block_until_ready(
        forward_padding(x4, d4, pair_budget_bytes=16 * 1024))
    assert out4.shape == (13, 256 + d4)
    assert jnp.array_equal(out4, _reference(x4, d4)), "lane-tiled path mismatch"

    print("KERNEL_OK")
</pallas_src>

<mosaic_0001>
module attributes {stable_mosaic.version = 11 : i64} {
  func.func @_pad_rows_kernel(%arg0: i32, %arg1: memref<8x16xf32, #tpu.memory_space<vmem>>, %arg2: memref<8x20xf32, #tpu.memory_space<vmem>>) attributes {dimension_semantics = [#tpu.dimension_semantics<parallel>], iteration_bounds = array<i64: 1>, scalar_prefetch = 0 : i64, scratch_operands = 0 : i64, tpu.core_type = #tpu.core_type<tc>, window_params = [{transform_indices = @transform_0, window_bounds = array<i64: 8, 16>}, {transform_indices = @transform_1, window_bounds = array<i64: 8, 20>}]} {
    %c0 = arith.constant 0 : index
    %c0_0 = arith.constant 0 : index
    %0 = vector.load %arg1[%c0, %c0_0] : memref<8x16xf32, #tpu.memory_space<vmem>>, vector<8x16xf32>
    %c0_1 = arith.constant 0 : index
    %c0_2 = arith.constant 0 : index
    %1 = vector.load %arg2[%c0_1, %c0_2] : memref<8x20xf32, #tpu.memory_space<vmem>>, vector<8x16xf32>
    tpu.vector_store %arg2[%c0_1, %c0_2], %0 {strides = array<i32>} : memref<8x20xf32, #tpu.memory_space<vmem>>, vector<8x16xf32>,
    %c0_3 = arith.constant 0 : index
    %c0_4 = arith.constant 0 : index
    %2 = vector.load %arg1[%c0_3, %c0_4] : memref<8x16xf32, #tpu.memory_space<vmem>>, vector<8x4xf32>
    %c0_5 = arith.constant 0 : index
    %c16 = arith.constant 16 : index
    %3 = vector.load %arg2[%c0_5, %c16] : memref<8x20xf32, #tpu.memory_space<vmem>>, vector<8x4xf32>
    tpu.vector_store %arg2[%c0_5, %c16], %2 {strides = array<i32>} : memref<8x20xf32, #tpu.memory_space<vmem>>, vector<8x4xf32>,
    return
  }
  func.func @transform_0(%arg0: i32) -> (i32, i32) {
    %c0_i32 = arith.constant 0 : i32
    %c0_i32_0 = arith.constant 0 : i32
    return %arg0, %c0_i32 : i32, i32
  }
  func.func @transform_1(%arg0: i32) -> (i32, i32) {
    %c0_i32 = arith.constant 0 : i32
    %c0_i32_0 = arith.constant 0 : i32
    return %arg0, %c0_i32 : i32, i32
  }
}

</mosaic_0001>

<llo_original>
// kernel: tpu_custom_call.1
$region0: #{tpu_custom_call.1}
  #allocation0 [shape = 'u32[]', space=smem, size = 0x4, offset = 0x4, fixed_abs, tag = 'smem constant byte address 0x4 - core index']
  #allocation1 [shape = 'u32[144,128]{1,0:T(1,128)}', space=vmem, size = 0x12000, scoped, tag = 'internal scratch']
  %s0 = inlined_call_operand.hbm [shape: f32[8,16], index: 0, kind: input, shape index: {}]
  %s1 = inlined_call_operand.hbm [shape: f32[8,20], index: 1, kind: output, shape index: {}]
  %s2 = sld [smem:[#allocation0]]
  $region18: #{tpu_custom_call.1} parent=0
    _
  %s4 = ssub.s32 1, %s2
  %s5 = scalar_select 0, %s4, %s2
  $region1: #{tpu_custom_call.1} parent=0
    #allocation2 [shape = 'u8[4096]{0}', space=vmem, size = 0x1000, scoped, tag = 'input window, operand 0, single buffered']
    #allocation3 [shape = 's32[1]{0}', space=sflag, size = 0x4, scoped, tag = 'scoped memory for tpu_custom_call.1']
    #allocation4 [shape = 's32[1]{0}', space=sflag, size = 0x4, scoped, tag = 'scoped memory for tpu_custom_call.1']
    #allocation5 [shape = 'u8[4096]{0}', space=vmem, size = 0x1000, scoped, tag = 'output window, operand 0, single buffered']
    %6 = vsyncpa [#allocation3], 0
    %7 = vsyncpa [#allocation4], 0
    // Predicated region
    $region2: #{tpu_custom_call.1} parent=1 // pred_check
      _
    $region3: #{tpu_custom_call.1} parent=1 // pred_check_branch
      %9 = sbr.rel (0) target = $region5
    $region4: #{tpu_custom_call.1} parent=1 // pred_region
      %s11 = ssub.s32 128, 128
      %12 = vsyncadd [#allocation3], %s11
      %s14 = sshll.u32 [#allocation2], 4
      %s15 = int_to_ptr.vmem [resolvable:$true] %s14
      %17 = dma.hbm_to_vmem [thread:$0]  %s0, 128, %s15, [#allocation3]
    $region5: #{tpu_custom_call.1} parent=1 // pred_fallthru
      _
    // Predicated region
    $region6: #{tpu_custom_call.1} parent=1 // pred_check
      _
    $region7: #{tpu_custom_call.1} parent=1 // pred_check_branch
      %19 = sbr.rel (0) target = $region9
    $region8: #{tpu_custom_call.1} parent=1 // pred_region
      %20 = dma.done [#allocation3], 128
    $region9: #{tpu_custom_call.1} parent=1 // pred_fallthru
      _
    %v21 = vld [vmem:[#allocation2] sm:$0xff]
    %vm22 = vcmask 130048
    %23 = vst.msk [vmem:[#allocation5] sm:$0xff] %vm22, %v21
    %v24 = vld [vmem:[#allocation2] sm:$0xff]
    %26 = vrot.lane.b32.xlu0 %v24, 16
    %v27 = vpop.permute.xlu0 %26
    %vm29 = vcmask 162944
    %30 = vst.msk [vmem:[#allocation5] sm:$0xff] %vm29, %v27
    // Predicated region
    $region10: #{tpu_custom_call.1} parent=1 // pred_check
      _
    $region11: #{tpu_custom_call.1} parent=1 // pred_check_branch
      %32 = sbr.rel (0) target = $region13
    $region12: #{tpu_custom_call.1} parent=1 // pred_region
      %s34 = ssub.s32 128, 128
      %35 = vsyncadd [#allocation4], %s34
      %s37 = sshll.u32 [#allocation5], 4
      %s38 = int_to_ptr.vmem [resolvable:$true] %s37
      %40 = dma.vmem_to_hbm [thread:$0]  %s38, 128, %s1, [#allocation4]
    $region13: #{tpu_custom_call.1} parent=1 // pred_fallthru
      _
    // Predicated region
    $region14: #{tpu_custom_call.1} parent=1 // pred_check
      _
    $region15: #{tpu_custom_call.1} parent=1 // pred_check_branch
      %42 = sbr.rel (0) target = $region17
    $region16: #{tpu_custom_call.1} parent=1 // pred_region
      %43 = dma.done [#allocation4], 128
    $region17: #{tpu_custom_call.1} parent=1 // pred_fallthru
      _
    %44 = vsyncpa [#allocation3], 1
    %45 = vsyncpa [#allocation4], 1

</llo_original>
